<compile_context>
chip_gen: v7x
topology: tpu7x:2x2x1
jax: 0.10.0
libtpu: 0.0.40
codegen_flags: <defaults>
</compile_context>

<pallas_src>
import functools

import jax
import jax.numpy as jnp
from jax.experimental import pallas as pl
from jax.experimental.pallas import tpu as pltpu

_HIDDEN_PAD = 128  # pad hidden 125 -> 128 (lane-aligned; padded units are exact zeros)


def _round_up(x, m):
    return ((x + m - 1) // m) * m


def _disc_kernel(data_ref, cond_ref, w1a_ref, w1b_ref, b1_ref, w2_ref, b2_ref,
                 out_ref):
    # Layer 1: concat([data, cond], 1) @ W1  ==  data @ W1a + cond @ W1b
    # bf16 operands on the MXU, f32 accumulation.
    h = jnp.dot(data_ref[...], w1a_ref[...], preferred_element_type=jnp.float32)
    h = h + jnp.dot(cond_ref[...], w1b_ref[...], preferred_element_type=jnp.float32)
    h = jnp.maximum(h + b1_ref[...], 0.0)                        # (TB, 128) ReLU, f32
    # Layer 2 (128 -> 1): VPU multiply + XLU lane reduce.  Profile-gated
    # alternative: MXU matmul against a padded (128,128) W2 if the XLU binds.
    y = jnp.sum(h * w2_ref[...], axis=-1, keepdims=True) + b2_ref[...]
    out_ref[...] = jax.nn.sigmoid(y).astype(out_ref.dtype)       # (TB, 1)


def prepare_params(w1, b1, w2, b2):
    """One-time weight prep, hoisted out of the per-call path.

    Pads hidden 125 -> 128 (zero rows / zero bias entries, so results are
    exact), splits W1 into its data/condition halves, and casts the matmul
    weights to bf16.  Biases and the 128->1 projection row stay f32.
    """
    in1, hidden = w1.shape
    item_count = in1 // 2
    hpad = _round_up(max(hidden, _HIDDEN_PAD), _HIDDEN_PAD)
    w1p = jnp.pad(w1, ((0, 0), (0, hpad - hidden)))
    w1a = w1p[:item_count, :].astype(jnp.bfloat16)               # multiplies `data`
    w1b = w1p[item_count:, :].astype(jnp.bfloat16)               # multiplies `condition`
    b1p = jnp.pad(b1, (0, hpad - hidden)).astype(jnp.float32).reshape(1, hpad)
    w2p = jnp.pad(w2, ((0, hpad - hidden), (0, 0))).astype(jnp.float32).reshape(1, hpad)
    b2p = b2.astype(jnp.float32).reshape(1, 1)
    return (w1a, w1b, b1p, w2p, b2p)


@functools.partial(jax.jit, static_argnames=("block_b",))
def discriminator_forward(data, condition, params, *, block_b=None):
    w1a, w1b, b1p, w2p, b2p = params
    B, item_count = data.shape
    assert condition.shape == (B, item_count)
    assert w1a.shape[0] == item_count
    hpad = w1a.shape[1]

    # ---- batch tile: derived from item_count + a per-step VMEM budget -------
    if block_b is None:
        # Per-tb-row VMEM bytes per grid step:
        #   2 inputs x 2 buffers x item_count x 2B (bf16)  -> 8 * item_count
        #   ~3 f32 (tb, 128) intermediates (h, h*w2, ...)  -> 1536
        budget = 10 * 1024 * 1024          # safe under every gen's scoped default
        tb = budget // (8 * item_count + 3 * hpad * 4)
        tb = max(8, min(tb, 8192))         # big tiles amortize ~0.35us/step overhead
    else:
        tb = max(8, int(block_b))
    if B >= 16:
        # Keep >= 2 grid steps so the "parallel" axis can shard across the two
        # TensorCores of a v7x chip (no cost on single-TC v5e/v6e).
        tb = min(tb, _round_up(pl.cdiv(B, 2), 8))
    tb = _round_up(min(tb, _round_up(B, 8)), 8)    # always sublane-aligned

    num_tiles = pl.cdiv(B, tb)
    bp = num_tiles * tb

    # bf16 inputs: halves input DMA bytes and gives single-pass bf16 MXU matmuls.
    data = data.astype(jnp.bfloat16)
    condition = condition.astype(jnp.bfloat16)
    if bp != B:
        pad = ((0, bp - B), (0, 0))
        data = jnp.pad(data, pad)
        condition = jnp.pad(condition, pad)

    batch_spec = pl.BlockSpec((tb, item_count), lambda i: (i, 0))
    full = lambda shape: pl.BlockSpec(shape, lambda i: (0,) * len(shape))

    # Explicit VMEM limit sized from the chosen tile (review item #1).
    weight_bytes = (w1a.size + w1b.size) * 2 + (b1p.size + w2p.size + b2p.size) * 4
    est_vmem = (
        2 * (2 * tb * item_count * 2)     # data+cond, double-buffered, bf16
        + 2 * (tb * 4)                    # double-buffered f32 output column
        + 4 * tb * hpad * 4               # f32 intermediates headroom
        + 2 * weight_bytes
    )
    vmem_limit = int(min(64 * 1024 * 1024, est_vmem + (4 * 1024 * 1024)))

    out = pl.pallas_call(
        _disc_kernel,
        out_shape=jax.ShapeDtypeStruct((bp, 1), jnp.float32),
        grid=(num_tiles,),
        in_specs=[
            batch_spec,            # data      (tb, item_count) bf16
            batch_spec,            # condition (tb, item_count) bf16
            full(w1a.shape),       # W1, data half       (item_count, 128) bf16
            full(w1b.shape),       # W1, condition half  (item_count, 128) bf16
            full(b1p.shape),       # b1                  (1, 128) f32
            full(w2p.shape),       # W2 as a row         (1, 128) f32
            full(b2p.shape),       # b2                  (1, 1)   f32
        ],
        out_specs=pl.BlockSpec((tb, 1), lambda i: (i, 0)),
        compiler_params=pltpu.CompilerParams(
            dimension_semantics=("parallel",),
            vmem_limit_bytes=vmem_limit),
    )(data, condition, w1a, w1b, b1p, w2p, b2p)

    return out[:B]


def init_params(key, item_count, hidden=125):
    # Matches nn.Linear shapes of the PyTorch module, stored transposed as
    # (in, out) so the kernel computes x @ W directly.
    k1, k2, k3, k4 = jax.random.split(key, 4)
    in1 = item_count * 2
    lim1 = 1.0 / jnp.sqrt(in1)
    lim2 = 1.0 / jnp.sqrt(hidden)
    w1 = jax.random.uniform(k1, (in1, hidden), jnp.float32, -lim1, lim1)
    b1 = jax.random.uniform(k2, (hidden,), jnp.float32, -lim1, lim1)
    w2 = jax.random.uniform(k3, (hidden, 1), jnp.float32, -lim2, lim2)
    b2 = jax.random.uniform(k4, (1,), jnp.float32, -lim2, lim2)
    return w1, b1, w2, b2


if __name__ == "__main__":
    key = jax.random.PRNGKey(0)
    item_count = 16

    k_data, k_cond, k_params = jax.random.split(key, 3)
    w1, b1, w2, b2 = init_params(k_params, item_count)
    params = prepare_params(w1, b1, w2, b2)   # hoisted, one-time weight prep

    def reference(d, c):
        x = jnp.concatenate([d, c], axis=1)
        return jax.nn.sigmoid(jnp.maximum(x @ w1 + b1, 0.0) @ w2 + b2)

    # Tiny batch (matches the PyTorch module's typical usage scale).
    batch = 2
    data = jax.random.normal(k_data, (batch, item_count), jnp.float32)
    condition = jax.random.normal(k_cond, (batch, item_count), jnp.float32)
    out = jax.block_until_ready(discriminator_forward(data, condition, params))
    assert out.shape == (batch, 1)
    # bf16 matmul inputs -> loosen tolerance slightly vs the f32 reference.
    assert jnp.allclose(out, reference(data, condition), atol=2e-2), (
        out, reference(data, condition))

    # Multi-tile batch with the derived tile (B >= 16 -> at least 2 grid steps).
    batch2 = 300
    data2 = jax.random.normal(k_data, (batch2, item_count), jnp.float32)
    condition2 = jax.random.normal(k_cond, (batch2, item_count), jnp.float32)
    out2 = jax.block_until_ready(discriminator_forward(data2, condition2, params))
    assert out2.shape == (batch2, 1)
    assert jnp.allclose(out2, reference(data2, condition2), atol=2e-2)

    # Non-multiple-of-8 user block_b: exercises the alignment fix (100 -> 104).
    out3 = jax.block_until_ready(
        discriminator_forward(data2, condition2, params, block_b=100))
    assert out3.shape == (batch2, 1)
    assert jnp.allclose(out3, reference(data2, condition2), atol=2e-2)

    print("KERNEL_OK")
</pallas_src>

<mosaic_0001>
module attributes {stable_mosaic.version = 11 : i64} {
  func.func @_disc_kernel(%arg0: i32, %arg1: memref<8x16xbf16, #tpu.memory_space<vmem>>, %arg2: memref<8x16xbf16, #tpu.memory_space<vmem>>, %arg3: memref<16x128xbf16, #tpu.memory_space<vmem>>, %arg4: memref<16x128xbf16, #tpu.memory_space<vmem>>, %arg5: memref<1x128xf32, #tpu.memory_space<vmem>>, %arg6: memref<1x128xf32, #tpu.memory_space<vmem>>, %arg7: memref<1x1xf32, #tpu.memory_space<vmem>>, %arg8: memref<8x1xf32, #tpu.memory_space<vmem>>) attributes {dimension_semantics = [#tpu.dimension_semantics<parallel>], iteration_bounds = array<i64: 1>, scalar_prefetch = 0 : i64, scratch_operands = 0 : i64, tpu.core_type = #tpu.core_type<tc>, window_params = [{transform_indices = @transform_0, window_bounds = array<i64: 8, 16>}, {transform_indices = @transform_1, window_bounds = array<i64: 8, 16>}, {pipeline_mode = #tpu.pipeline_mode<synchronous>, transform_indices = @transform_2, window_bounds = array<i64: 16, 128>}, {pipeline_mode = #tpu.pipeline_mode<synchronous>, transform_indices = @transform_3, window_bounds = array<i64: 16, 128>}, {pipeline_mode = #tpu.pipeline_mode<synchronous>, transform_indices = @transform_4, window_bounds = array<i64: 1, 128>}, {pipeline_mode = #tpu.pipeline_mode<synchronous>, transform_indices = @transform_5, window_bounds = array<i64: 1, 128>}, {pipeline_mode = #tpu.pipeline_mode<synchronous>, transform_indices = @transform_6, window_bounds = array<i64: 1, 1>}, {transform_indices = @transform_7, window_bounds = array<i64: 8, 1>}]} {
    %c0 = arith.constant 0 : index
    %c0_0 = arith.constant 0 : index
    %0 = vector.load %arg1[%c0, %c0_0] : memref<8x16xbf16, #tpu.memory_space<vmem>>, vector<8x16xbf16>
    %c0_1 = arith.constant 0 : index
    %c0_2 = arith.constant 0 : index
    %1 = vector.load %arg3[%c0_1, %c0_2] : memref<16x128xbf16, #tpu.memory_space<vmem>>, vector<16x128xbf16>
    %cst = arith.constant dense<0.000000e+00> : vector<8x128xf32>
    %2 = tpu.matmul %0, %1, %cst {dimension_numbers = #tpu.dot_dimension_numbers<[1], [0], [0], [1], [0, 0, 1, 1], [], []>} : vector<8x16xbf16>, vector<16x128xbf16>, vector<8x128xf32> -> vector<8x128xf32>
    %c0_3 = arith.constant 0 : index
    %c0_4 = arith.constant 0 : index
    %3 = vector.load %arg2[%c0_3, %c0_4] : memref<8x16xbf16, #tpu.memory_space<vmem>>, vector<8x16xbf16>
    %c0_5 = arith.constant 0 : index
    %c0_6 = arith.constant 0 : index
    %4 = vector.load %arg4[%c0_5, %c0_6] : memref<16x128xbf16, #tpu.memory_space<vmem>>, vector<16x128xbf16>
    %cst_7 = arith.constant dense<0.000000e+00> : vector<8x128xf32>
    %5 = tpu.matmul %3, %4, %cst_7 {dimension_numbers = #tpu.dot_dimension_numbers<[1], [0], [0], [1], [0, 0, 1, 1], [], []>} : vector<8x16xbf16>, vector<16x128xbf16>, vector<8x128xf32> -> vector<8x128xf32>
    %6 = arith.addf %2, %5 : vector<8x128xf32>
    %c0_8 = arith.constant 0 : index
    %c0_9 = arith.constant 0 : index
    %7 = vector.load %arg5[%c0_8, %c0_9] : memref<1x128xf32, #tpu.memory_space<vmem>>, vector<1x128xf32>
    %8 = vector.broadcast %7 : vector<1x128xf32> to vector<8x128xf32>
    %9 = arith.addf %6, %8 : vector<8x128xf32>
    %cst_10 = arith.constant 0.000000e+00 : f32
    %10 = vector.broadcast %cst_10 : f32 to vector<8x128xf32>
    %11 = arith.maximumf %9, %10 : vector<8x128xf32>
    %c0_11 = arith.constant 0 : index
    %c0_12 = arith.constant 0 : index
    %12 = vector.load %arg6[%c0_11, %c0_12] : memref<1x128xf32, #tpu.memory_space<vmem>>, vector<1x128xf32>
    %13 = vector.broadcast %12 : vector<1x128xf32> to vector<8x128xf32>
    %14 = arith.mulf %11, %13 : vector<8x128xf32>
    %cst_13 = arith.constant dense<0.000000e+00> : vector<8xf32>
    %15 = vector.multi_reduction <add>, %14, %cst_13 [1] : vector<8x128xf32> to vector<8xf32>
    %16 = vector.shape_cast %15 : vector<8xf32> to vector<8x1xf32>
    %c0_14 = arith.constant 0 : index
    %c0_15 = arith.constant 0 : index
    %17 = vector.load %arg7[%c0_14, %c0_15] : memref<1x1xf32, #tpu.memory_space<vmem>>, vector<1x1xf32>
    %18 = vector.broadcast %17 : vector<1x1xf32> to vector<8x1xf32>
    %19 = arith.addf %16, %18 : vector<8x1xf32>
    %20 = arith.negf %19 : vector<8x1xf32>
    %21 = math.exp %20 : vector<8x1xf32>
    %cst_16 = arith.constant 1.000000e+00 : f32
    %22 = vector.broadcast %cst_16 : f32 to vector<8x1xf32>
    %23 = arith.addf %22, %21 : vector<8x1xf32>
    %24 = arith.divf %22, %23 : vector<8x1xf32>
    %c0_17 = arith.constant 0 : index
    %c0_18 = arith.constant 0 : index
    %25 = vector.load %arg8[%c0_17, %c0_18] : memref<8x1xf32, #tpu.memory_space<vmem>>, vector<8x1xf32>
    tpu.vector_store %arg8[%c0_17, %c0_18], %24 {strides = array<i32>} : memref<8x1xf32, #tpu.memory_space<vmem>>, vector<8x1xf32>,
    return
  }
  func.func @transform_0(%arg0: i32) -> (i32, i32) {
    %c0_i32 = arith.constant 0 : i32
    %c0_i32_0 = arith.constant 0 : i32
    return %arg0, %c0_i32 : i32, i32
  }
  func.func @transform_1(%arg0: i32) -> (i32, i32) {
    %c0_i32 = arith.constant 0 : i32
    %c0_i32_0 = arith.constant 0 : i32
    return %arg0, %c0_i32 : i32, i32
  }
  func.func @transform_2(%arg0: i32) -> (i32, i32) {
    %c0_i32 = arith.constant 0 : i32
    %c0_i32_0 = arith.constant 0 : i32
    %c0_i32_1 = arith.constant 0 : i32
    return %c0_i32, %c0_i32_0 : i32, i32
  }
  func.func @transform_3(%arg0: i32) -> (i32, i32) {
    %c0_i32 = arith.constant 0 : i32
    %c0_i32_0 = arith.constant 0 : i32
    %c0_i32_1 = arith.constant 0 : i32
    return %c0_i32, %c0_i32_0 : i32, i32
  }
  func.func @transform_4(%arg0: i32) -> (i32, i32) {
    %c0_i32 = arith.constant 0 : i32
    %c0_i32_0 = arith.constant 0 : i32
    %c0_i32_1 = arith.constant 0 : i32
    return %c0_i32, %c0_i32_0 : i32, i32
  }
  func.func @transform_5(%arg0: i32) -> (i32, i32) {
    %c0_i32 = arith.constant 0 : i32
    %c0_i32_0 = arith.constant 0 : i32
    %c0_i32_1 = arith.constant 0 : i32
    return %c0_i32, %c0_i32_0 : i32, i32
  }
  func.func @transform_6(%arg0: i32) -> (i32, i32) {
    %c0_i32 = arith.constant 0 : i32
    %c0_i32_0 = arith.constant 0 : i32
    %c0_i32_1 = arith.constant 0 : i32
    return %c0_i32, %c0_i32_0 : i32, i32
  }
  func.func @transform_7(%arg0: i32) -> (i32, i32) {
    %c0_i32 = arith.constant 0 : i32
    %c0_i32_0 = arith.constant 0 : i32
    return %arg0, %c0_i32 : i32, i32
  }
}

</mosaic_0001>

<llo_original>
// kernel: discriminator_forward.1
$region0: #{discriminator_forward.1}
  #allocation0 [shape = 'u32[]', space=smem, size = 0x4, offset = 0x4, fixed_abs, tag = 'smem constant byte address 0x4 - core index']
  #allocation1 [shape = 'u32[144,128]{1,0:T(1,128)}', space=vmem, size = 0x12000, scoped, tag = 'internal scratch']
  #allocation2 [shape = 'f32[1,1]{1,0:T(1,128)S(1)}', space=vmem, size = 0x200, scoped, tag = 'scoped memory for discriminator_forward.1']
  %s0 = inlined_call_operand.vmem [shape: bf16[8,16], index: 0, kind: input, shape index: {}]
  %s1 = inlined_call_operand.vmem [shape: bf16[8,16], index: 1, kind: input, shape index: {}]
  %s2 = inlined_call_operand.vmem [shape: bf16[16,128], index: 2, kind: input, shape index: {}]
  %s3 = inlined_call_operand.vmem [shape: bf16[16,128], index: 3, kind: input, shape index: {}]
  %s4 = inlined_call_operand.vmem [shape: f32[1,128], index: 4, kind: input, shape index: {}]
  %s5 = inlined_call_operand.vmem [shape: f32[1,128], index: 5, kind: input, shape index: {}]
  %s6 = inlined_call_operand.<no memory space> [shape: f32[1,1], index: 6, kind: input, shape index: {}]
  %s7 = inlined_call_operand.vmem [shape: f32[8,1], index: 7, kind: output, shape index: {}]
  %s8 = sld [smem:[#allocation0]]
  $region38: #{discriminator_forward.1} parent=0
    _
  %s10 = ssub.s32 1, %s8
  %s11 = scalar_select 0, %s10, %s8
  %v12 = vstv %s6
  %13 = vst [vmem:[#allocation2] sm:$0x1] %v12
  // Predicated region
  $region2: #{discriminator_forward.1} parent=0 // pred_check
    _
  $region3: #{discriminator_forward.1} parent=0 // pred_check_branch
    %15 = sbr.rel (0) target = $region5
  $region4: #{discriminator_forward.1} parent=0 // pred_region
    _
  $region5: #{discriminator_forward.1} parent=0 // pred_fallthru
    _
  // Predicated region
  $region6: #{discriminator_forward.1} parent=0 // pred_check
    _
  $region7: #{discriminator_forward.1} parent=0 // pred_check_branch
    %17 = sbr.rel (0) target = $region9
  $region8: #{discriminator_forward.1} parent=0 // pred_region
    _
  $region9: #{discriminator_forward.1} parent=0 // pred_fallthru
    _
  // Predicated region
  $region10: #{discriminator_forward.1} parent=0 // pred_check
    _
  $region11: #{discriminator_forward.1} parent=0 // pred_check_branch
    %19 = sbr.rel (0) target = $region13
  $region12: #{discriminator_forward.1} parent=0 // pred_region
    _
  $region13: #{discriminator_forward.1} parent=0 // pred_fallthru
    _
  // Predicated region
  $region14: #{discriminator_forward.1} parent=0 // pred_check
    _
  $region15: #{discriminator_forward.1} parent=0 // pred_check_branch
    %21 = sbr.rel (0) target = $region17
  $region16: #{discriminator_forward.1} parent=0 // pred_region
    _
  $region17: #{discriminator_forward.1} parent=0 // pred_fallthru
    _
  // Predicated region
  $region18: #{discriminator_forward.1} parent=0 // pred_check
    _
  $region19: #{discriminator_forward.1} parent=0 // pred_check_branch
    %23 = sbr.rel (0) target = $region21
  $region20: #{discriminator_forward.1} parent=0 // pred_region
    _
  $region21: #{discriminator_forward.1} parent=0 // pred_fallthru
    _
  // Predicated region
  $region22: #{discriminator_forward.1} parent=0 // pred_check
    _
  $region23: #{discriminator_forward.1} parent=0 // pred_check_branch
    %25 = sbr.rel (0) target = $region25
  $region24: #{discriminator_forward.1} parent=0 // pred_region
    _
  $region25: #{discriminator_forward.1} parent=0 // pred_fallthru
    _
  // Predicated region
  $region26: #{discriminator_forward.1} parent=0 // pred_check
    _
  $region27: #{discriminator_forward.1} parent=0 // pred_check_branch
    %27 = sbr.rel (0) target = $region29
  $region28: #{discriminator_forward.1} parent=0 // pred_region
    _
  $region29: #{discriminator_forward.1} parent=0 // pred_fallthru
    _
  %v29 = vld [vmem:[%s0] sm:$0xf]
  %v30 = vld [vmem:[%s2] sm:$0xf]
  %v31 = vld [vmem:[%s2 + $0x4] sm:$0xf]
  %v32 = vld [vmem:[%s1] sm:$0xf]
  %v33 = vld [vmem:[%s3] sm:$0xf]
  %v34 = vld [vmem:[%s3 + $0x4] sm:$0xf]
  %v37 = vunpack.c.l.b16 %v33
  %v38 = vunpack.c.l.b16 %v34
  %v39 = vpack.c.b16 %v38, %v37
  %vm41 = vcmask 130048
  %v43 = vsel %vm41, %v32, 0
  %45 = vmatprep.subr.bf16.mxu0 0
  %46 = vmatpush1.bf16.msra.mxu0 %v39
  %47 = vmatprep.subr.bf16.mxu0 0
  %48 = vmatpush1.bf16.msra.mxu0 0
  %49 = vmatprep.subr.bf16.mxu0 0
  %50 = vmatpush1.bf16.msra.mxu0 0
  %51 = vmatprep.subr.bf16.mxu0 0
  %52 = vmatpush1.bf16.msra.mxu0 0
  %53 = vmatprep.subr.bf16.mxu0 0
  %54 = vmatpush1.bf16.msra.mxu0 0
  %55 = vmatprep.subr.bf16.mxu0 0
  %56 = vmatpush1.bf16.msra.mxu0 0
  %57 = vmatprep.subr.bf16.mxu0 0
  %58 = vmatpush1.bf16.msra.mxu0 0
  %59 = vmatprep.subr.bf16.mxu0 0
  %60 = vmatpush1.bf16.msra.mxu0 0
  %61 = vmatprep.subr.bf16.mxu0 0
  %62 = vmatpush1.bf16.msra.mxu0 0
  %63 = vmatprep.subr.bf16.mxu0 0
  %64 = vmatpush1.bf16.msra.mxu0 0
  %65 = vmatprep.subr.bf16.mxu0 0
  %66 = vmatpush1.bf16.msra.mxu0 0
  %67 = vmatprep.subr.bf16.mxu0 0
  %68 = vmatpush1.bf16.msra.mxu0 0
  %69 = vmatprep.subr.bf16.mxu0 0
  %70 = vmatpush1.bf16.msra.mxu0 0
  %71 = vmatprep.subr.bf16.mxu0 0
  %72 = vmatpush1.bf16.msra.mxu0 0
  %73 = vmatprep.subr.bf16.mxu0 0
  %74 = vmatpush1.bf16.msra.mxu0 0
  %75 = vmatprep.subr.bf16.mxu0 0
  %76 = vmatpush1.bf16.msra.mxu0 0
  %77 = vmatprep.mubr.bf16.mxu0 0
  %78 = vmatmul.mubr.bf16.gmra.mrb[0].mxu0 %v43
  %v79 = vpop.f32.mrb[0].mxu0
  %v80 = vadd.f32 0.0, %v79
  %v81 = vpop.f32.mrb[0].mxu0
  %v82 = vpop.f32.mrb[0].mxu0
  %v83 = vpop.f32.mrb[0].mxu0
  %84 = vdwg.mxu0
  %v87 = vunpack.c.l.b16 %v30
  %v88 = vunpack.c.l.b16 %v31
  %v89 = vpack.c.b16 %v88, %v87
  %v92 = vsel %vm41, %v29, 0
  %94 = vmatprep.subr.bf16.mxu0 0
  %95 = vmatpush1.bf16.msra.mxu0 %v89
  %96 = vmatprep.subr.bf16.mxu0 0
  %97 = vmatpush1.bf16.msra.mxu0 0
  %98 = vmatprep.subr.bf16.mxu0 0
  %99 = vmatpush1.bf16.msra.mxu0 0
  %100 = vmatprep.subr.bf16.mxu0 0
  %101 = vmatpush1.bf16.msra.mxu0 0
  %102 = vmatprep.subr.bf16.mxu0 0
  %103 = vmatpush1.bf16.msra.mxu0 0
  %104 = vmatprep.subr.bf16.mxu0 0
  %105 = vmatpush1.bf16.msra.mxu0 0
  %106 = vmatprep.subr.bf16.mxu0 0
  %107 = vmatpush1.bf16.msra.mxu0 0
  %108 = vmatprep.subr.bf16.mxu0 0
  %109 = vmatpush1.bf16.msra.mxu0 0
  %110 = vmatprep.subr.bf16.mxu0 0
  %111 = vmatpush1.bf16.msra.mxu0 0
  %112 = vmatprep.subr.bf16.mxu0 0
  %113 = vmatpush1.bf16.msra.mxu0 0
  %114 = vmatprep.subr.bf16.mxu0 0
  %115 = vmatpush1.bf16.msra.mxu0 0
  %116 = vmatprep.subr.bf16.mxu0 0
  %117 = vmatpush1.bf16.msra.mxu0 0
  %118 = vmatprep.subr.bf16.mxu0 0
  %119 = vmatpush1.bf16.msra.mxu0 0
  %120 = vmatprep.subr.bf16.mxu0 0
  %121 = vmatpush1.bf16.msra.mxu0 0
  %122 = vmatprep.subr.bf16.mxu0 0
  %123 = vmatpush1.bf16.msra.mxu0 0
  %124 = vmatprep.subr.bf16.mxu0 0
  %125 = vmatpush1.bf16.msra.mxu0 0
  %126 = vmatprep.mubr.bf16.mxu0 0
  %127 = vmatmul.mubr.bf16.gmra.mrb[0].mxu0 %v92
  %v128 = vpop.f32.mrb[0].mxu0
  %v129 = vadd.f32 %v80, %v128
  %v130 = vpop.f32.mrb[0].mxu0
  %v131 = vpop.f32.mrb[0].mxu0
  %v132 = vpop.f32.mrb[0].mxu0
  %133 = vdwg.mxu0
  %v134 = vld [vmem:[%s4] sm:$0x1]
  %v136 = vlaneseq
  %v137 = vshrl.u32 %v136, 7
  %v138 = vsub.s32 0, %v137
  %v139 = vrot.slane %v134, %v138
  %v141 = vadd.f32 %v129, %v139
  %v142 = vmax.f32 %v141, 0.0
  %v143 = vld [vmem:[%s5] sm:$0x1]
  %v145 = vlaneseq
  %v146 = vshrl.u32 %v145, 7
  %v147 = vsub.s32 0, %v146
  %v148 = vrot.slane %v143, %v147
  %v150 = vmul.f32 %v142, %v148
  %151 = vadd.xlane.f32.xlu0 %v150
  %v152 = vpop.xlane.xlu0 %151
  %v153 = vld [vmem:[#allocation2] sm:$0x1]
  %v155 = vlaneseq
  %v156 = vshrl.u32 %v155, 7
  %v157 = vsub.s32 0, %v156
  %v158 = vrot.slane %v153, %v157
  %v160 = vadd.f32 %v152, %v158
  %v161 = vxor.u32 %v160, 2147483648
  %v162 = vmul.f32 %v161, 1.442695
  %v163 = vpow.pop %v162
  %v164 = vadd.f32 %v163, 1.0
  %v165 = vrcp.pop %v164
  %v166 = vmul.f32 1.0, %v165
  %vm167 = vcmask 7168
  %168 = vst.msk [vmem:[%s7] sm:$0xff] %vm167, %v166
  // Predicated region
  $region30: #{discriminator_forward.1} parent=0 // pred_check
    _
  $region31: #{discriminator_forward.1} parent=0 // pred_check_branch
    %170 = sbr.rel (0) target = $region33
  $region32: #{discriminator_forward.1} parent=0 // pred_region
    _
  $region33: #{discriminator_forward.1} parent=0 // pred_fallthru
    _
  // Predicated region
  $region34: #{discriminator_forward.1} parent=0 // pred_check
    _
  $region35: #{discriminator_forward.1} parent=0 // pred_check_branch
    %172 = sbr.rel (0) target = $region37
  $region36: #{discriminator_forward.1} parent=0 // pred_region
    _
  $region37: #{discriminator_forward.1} parent=0 // pred_fallthru
    _

</llo_original>
